<compile_context>
chip_gen: v6e
topology: v6e:2x2x1
jax: 0.10.0
libtpu: 0.0.40
codegen_flags: <defaults>
</compile_context>

<pallas_src>
import functools

import jax
import jax.numpy as jnp
from jax.experimental import pallas as pl
from jax.experimental.pallas import tpu as pltpu


NORM_MEAN = jnp.array([19791.091, 0.0, 0.0, 650.0, 600.0], dtype=jnp.float32)
NORM_SCALE = jnp.array(
    [60261.0, 6.28318530718, 6.28318530718, 1100.0, 1200.0], dtype=jnp.float32
)

_HIDDEN_LAYERS = 6  # H0..H5


def acas_kernel(
    x_ref,
    w0_ref, b0_ref,
    w1_ref, b1_ref,
    w2_ref, b2_ref,
    w3_ref, b3_ref,
    w4_ref, b4_ref,
    w5_ref, b5_ref,
    wo_ref, bo_ref,
    out_ref,
):
    """Activations are (features, TILE_B); weights are (out, in); bias (out, 1)."""
    h = x_ref[...]  # (5, TILE_B) -- normalization already folded into W0/b0

    def linear_relu(h, w_ref, b_ref):
        y = jnp.dot(w_ref[...], h, preferred_element_type=jnp.float32) + b_ref[...]
        return jnp.maximum(y, 0.0)

    h = linear_relu(h, w0_ref, b0_ref)
    h = linear_relu(h, w1_ref, b1_ref)
    h = linear_relu(h, w2_ref, b2_ref)
    h = linear_relu(h, w3_ref, b3_ref)
    h = linear_relu(h, w4_ref, b4_ref)
    h = linear_relu(h, w5_ref, b5_ref)

    # Final layer: negation already folded into wo/bo.
    out_ref[...] = (
        jnp.dot(wo_ref[...], h, preferred_element_type=jnp.float32) + bo_ref[...]
    )


def _fold_params(params):
    """Fold normalize into layer 0 and negation into the output layer.

    params: list of (W, b) in PyTorch nn.Linear layout: W (out, in), b (out,).
    Returns a flat list [W0', b0', W1, b1, ..., Wo', bo'] with biases (out, 1).
    """
    inv_scale = 1.0 / NORM_SCALE                      # (5,)
    mean_over_scale = NORM_MEAN * inv_scale           # (5,)

    folded = []
    for i, (w, b) in enumerate(params):
        w = jnp.asarray(w, jnp.float32)
        b = jnp.asarray(b, jnp.float32)
        if i == 0:
            # relu(W0 @ ((x - m)/s) + b0) == relu((W0 * (1/s)) @ x + (b0 - W0 @ (m/s)))
            b = b - w @ mean_over_scale
            w = w * inv_scale[None, :]
        if i == len(params) - 1:
            # forward() returns -(Wo @ h + bo)
            w = -w
            b = -b
        folded.append(w)
        folded.append(b.reshape(-1, 1))               # (out, 1): broadcast over lanes
    return folded


def _round_up(x, m):
    return (x + m - 1) // m * m


@functools.partial(jax.jit, static_argnames=("tile_b",))
def _acas_forward_padded(xt_pad, flat_params, tile_b):
    b_pad = xt_pad.shape[1]
    grid = (b_pad // tile_b,)

    act_spec = pl.BlockSpec((5, tile_b), lambda i: (0, i))
    # Weights / biases: full-array blocks, constant index_map -> fetched once,
    # stay resident in VMEM across all batch tiles.
    param_specs = [
        pl.BlockSpec(p.shape, lambda i: (0, 0)) for p in flat_params
    ]

    return pl.pallas_call(
        acas_kernel,
        out_shape=jax.ShapeDtypeStruct((5, b_pad), jnp.float32),
        grid_spec=pltpu.PrefetchScalarGridSpec(
            num_scalar_prefetch=0,
            grid=grid,
            in_specs=[act_spec] + param_specs,
            out_specs=act_spec,
        ),
        compiler_params=pltpu.CompilerParams(
            dimension_semantics=("parallel",),
        ),
    )(xt_pad, *flat_params)


def acas_forward(x, params, tile_b=512):
    """x: (B, 5) float32. params: list of (W, b), PyTorch layout W (out, in)."""
    B = x.shape[0]
    flat_params = _fold_params(params)

    # Batch on lanes: pad B to a multiple of the (128-aligned) tile.
    tile_b = min(tile_b, _round_up(B, 128))
    b_pad = _round_up(B, tile_b)

    xt = jnp.asarray(x, jnp.float32).T                # (5, B)
    xt_pad = jnp.pad(xt, ((0, 0), (0, b_pad - B)))    # (5, B_pad)

    out_t = _acas_forward_padded(xt_pad, tuple(flat_params), tile_b)
    return out_t[:, :B].T                             # (B, 5)


def init_params(key):
    """Deterministic synthetic init matching ACASNet layer shapes (PyTorch layout)."""
    dims = [(5, 50), (50, 50), (50, 50), (50, 50), (50, 50), (50, 50), (50, 5)]
    params = []
    for din, dout in dims:
        key, kw, kb = jax.random.split(key, 3)
        bound = 1.0 / jnp.sqrt(jnp.float32(din))      # PyTorch nn.Linear default range
        w = jax.random.uniform(kw, (dout, din), jnp.float32, -bound, bound)
        b = jax.random.uniform(kb, (dout,), jnp.float32, -bound, bound)
        params.append((w, b))
    return params


def acas_reference(x, params):
    """Pure-JAX reference matching the PyTorch forward exactly."""
    h = (x - NORM_MEAN[None, :]) / NORM_SCALE[None, :]
    for w, b in params[:-1]:
        h = jnp.maximum(h @ w.T + b, 0.0)
    w, b = params[-1]
    return -(h @ w.T + b)


if __name__ == "__main__":
    key = jax.random.PRNGKey(0)
    key, kx = jax.random.split(key)
    params = init_params(key)

    B = 8
    # synthetic ACAS-Xu-like inputs: [range, theta, psi, v_own, v_int]
    lo = jnp.array([0.0, -3.1415, -3.1415, 100.0, 0.0], dtype=jnp.float32)
    hi = jnp.array([60760.0, 3.1415, 3.1415, 1200.0, 1200.0], dtype=jnp.float32)
    x = jax.random.uniform(kx, (B, 5), jnp.float32) * (hi - lo) + lo

    out = acas_forward(x, params)
    out = jax.block_until_ready(out)

    ref = acas_reference(x, params)
    assert out.shape == (B, 5)
    assert jnp.allclose(out, ref, atol=1e-4, rtol=1e-4), "mismatch vs reference"

    print("KERNEL_OK")
</pallas_src>

<mosaic_0001>
module attributes {stable_mosaic.version = 11 : i64} {
  func.func @acas_kernel(%arg0: i32, %arg1: memref<5x128xf32, #tpu.memory_space<vmem>>, %arg2: memref<50x5xf32, #tpu.memory_space<vmem>>, %arg3: memref<50x1xf32, #tpu.memory_space<vmem>>, %arg4: memref<50x50xf32, #tpu.memory_space<vmem>>, %arg5: memref<50x1xf32, #tpu.memory_space<vmem>>, %arg6: memref<50x50xf32, #tpu.memory_space<vmem>>, %arg7: memref<50x1xf32, #tpu.memory_space<vmem>>, %arg8: memref<50x50xf32, #tpu.memory_space<vmem>>, %arg9: memref<50x1xf32, #tpu.memory_space<vmem>>, %arg10: memref<50x50xf32, #tpu.memory_space<vmem>>, %arg11: memref<50x1xf32, #tpu.memory_space<vmem>>, %arg12: memref<50x50xf32, #tpu.memory_space<vmem>>, %arg13: memref<50x1xf32, #tpu.memory_space<vmem>>, %arg14: memref<5x50xf32, #tpu.memory_space<vmem>>, %arg15: memref<5x1xf32, #tpu.memory_space<vmem>>, %arg16: memref<5x128xf32, #tpu.memory_space<vmem>>) attributes {dimension_semantics = [#tpu.dimension_semantics<parallel>], iteration_bounds = array<i64: 1>, scalar_prefetch = 0 : i64, scratch_operands = 0 : i64, tpu.core_type = #tpu.core_type<tc>, window_params = [{transform_indices = @transform_0, window_bounds = array<i64: 5, 128>}, {pipeline_mode = #tpu.pipeline_mode<synchronous>, transform_indices = @transform_1, window_bounds = array<i64: 50, 5>}, {pipeline_mode = #tpu.pipeline_mode<synchronous>, transform_indices = @transform_2, window_bounds = array<i64: 50, 1>}, {pipeline_mode = #tpu.pipeline_mode<synchronous>, transform_indices = @transform_3, window_bounds = array<i64: 50, 50>}, {pipeline_mode = #tpu.pipeline_mode<synchronous>, transform_indices = @transform_4, window_bounds = array<i64: 50, 1>}, {pipeline_mode = #tpu.pipeline_mode<synchronous>, transform_indices = @transform_5, window_bounds = array<i64: 50, 50>}, {pipeline_mode = #tpu.pipeline_mode<synchronous>, transform_indices = @transform_6, window_bounds = array<i64: 50, 1>}, {pipeline_mode = #tpu.pipeline_mode<synchronous>, transform_indices = @transform_7, window_bounds = array<i64: 50, 50>}, {pipeline_mode = #tpu.pipeline_mode<synchronous>, transform_indices = @transform_8, window_bounds = array<i64: 50, 1>}, {pipeline_mode = #tpu.pipeline_mode<synchronous>, transform_indices = @transform_9, window_bounds = array<i64: 50, 50>}, {pipeline_mode = #tpu.pipeline_mode<synchronous>, transform_indices = @transform_10, window_bounds = array<i64: 50, 1>}, {pipeline_mode = #tpu.pipeline_mode<synchronous>, transform_indices = @transform_11, window_bounds = array<i64: 50, 50>}, {pipeline_mode = #tpu.pipeline_mode<synchronous>, transform_indices = @transform_12, window_bounds = array<i64: 50, 1>}, {pipeline_mode = #tpu.pipeline_mode<synchronous>, transform_indices = @transform_13, window_bounds = array<i64: 5, 50>}, {pipeline_mode = #tpu.pipeline_mode<synchronous>, transform_indices = @transform_14, window_bounds = array<i64: 5, 1>}, {transform_indices = @transform_15, window_bounds = array<i64: 5, 128>}]} {
    %c0 = arith.constant 0 : index
    %c0_0 = arith.constant 0 : index
    %0 = vector.load %arg1[%c0, %c0_0] : memref<5x128xf32, #tpu.memory_space<vmem>>, vector<5x128xf32>
    %c0_1 = arith.constant 0 : index
    %c0_2 = arith.constant 0 : index
    %1 = vector.load %arg2[%c0_1, %c0_2] : memref<50x5xf32, #tpu.memory_space<vmem>>, vector<50x5xf32>
    %cst = arith.constant dense<0.000000e+00> : vector<50x128xf32>
    %2 = tpu.matmul %1, %0, %cst {dimension_numbers = #tpu.dot_dimension_numbers<[1], [0], [0], [1], [0, 0, 1, 1], [], []>} : vector<50x5xf32>, vector<5x128xf32>, vector<50x128xf32> -> vector<50x128xf32>
    %c0_3 = arith.constant 0 : index
    %c0_4 = arith.constant 0 : index
    %3 = vector.load %arg3[%c0_3, %c0_4] : memref<50x1xf32, #tpu.memory_space<vmem>>, vector<50x1xf32>
    %4 = vector.broadcast %3 : vector<50x1xf32> to vector<50x128xf32>
    %5 = arith.addf %2, %4 : vector<50x128xf32>
    %cst_5 = arith.constant 0.000000e+00 : f32
    %6 = vector.broadcast %cst_5 : f32 to vector<50x128xf32>
    %7 = arith.maximumf %5, %6 : vector<50x128xf32>
    %c0_6 = arith.constant 0 : index
    %c0_7 = arith.constant 0 : index
    %8 = vector.load %arg4[%c0_6, %c0_7] : memref<50x50xf32, #tpu.memory_space<vmem>>, vector<50x50xf32>
    %cst_8 = arith.constant dense<0.000000e+00> : vector<50x128xf32>
    %9 = tpu.matmul %8, %7, %cst_8 {dimension_numbers = #tpu.dot_dimension_numbers<[1], [0], [0], [1], [0, 0, 1, 1], [], []>} : vector<50x50xf32>, vector<50x128xf32>, vector<50x128xf32> -> vector<50x128xf32>
    %c0_9 = arith.constant 0 : index
    %c0_10 = arith.constant 0 : index
    %10 = vector.load %arg5[%c0_9, %c0_10] : memref<50x1xf32, #tpu.memory_space<vmem>>, vector<50x1xf32>
    %11 = vector.broadcast %10 : vector<50x1xf32> to vector<50x128xf32>
    %12 = arith.addf %9, %11 : vector<50x128xf32>
    %cst_11 = arith.constant 0.000000e+00 : f32
    %13 = vector.broadcast %cst_11 : f32 to vector<50x128xf32>
    %14 = arith.maximumf %12, %13 : vector<50x128xf32>
    %c0_12 = arith.constant 0 : index
    %c0_13 = arith.constant 0 : index
    %15 = vector.load %arg6[%c0_12, %c0_13] : memref<50x50xf32, #tpu.memory_space<vmem>>, vector<50x50xf32>
    %cst_14 = arith.constant dense<0.000000e+00> : vector<50x128xf32>
    %16 = tpu.matmul %15, %14, %cst_14 {dimension_numbers = #tpu.dot_dimension_numbers<[1], [0], [0], [1], [0, 0, 1, 1], [], []>} : vector<50x50xf32>, vector<50x128xf32>, vector<50x128xf32> -> vector<50x128xf32>
    %c0_15 = arith.constant 0 : index
    %c0_16 = arith.constant 0 : index
    %17 = vector.load %arg7[%c0_15, %c0_16] : memref<50x1xf32, #tpu.memory_space<vmem>>, vector<50x1xf32>
    %18 = vector.broadcast %17 : vector<50x1xf32> to vector<50x128xf32>
    %19 = arith.addf %16, %18 : vector<50x128xf32>
    %cst_17 = arith.constant 0.000000e+00 : f32
    %20 = vector.broadcast %cst_17 : f32 to vector<50x128xf32>
    %21 = arith.maximumf %19, %20 : vector<50x128xf32>
    %c0_18 = arith.constant 0 : index
    %c0_19 = arith.constant 0 : index
    %22 = vector.load %arg8[%c0_18, %c0_19] : memref<50x50xf32, #tpu.memory_space<vmem>>, vector<50x50xf32>
    %cst_20 = arith.constant dense<0.000000e+00> : vector<50x128xf32>
    %23 = tpu.matmul %22, %21, %cst_20 {dimension_numbers = #tpu.dot_dimension_numbers<[1], [0], [0], [1], [0, 0, 1, 1], [], []>} : vector<50x50xf32>, vector<50x128xf32>, vector<50x128xf32> -> vector<50x128xf32>
    %c0_21 = arith.constant 0 : index
    %c0_22 = arith.constant 0 : index
    %24 = vector.load %arg9[%c0_21, %c0_22] : memref<50x1xf32, #tpu.memory_space<vmem>>, vector<50x1xf32>
    %25 = vector.broadcast %24 : vector<50x1xf32> to vector<50x128xf32>
    %26 = arith.addf %23, %25 : vector<50x128xf32>
    %cst_23 = arith.constant 0.000000e+00 : f32
    %27 = vector.broadcast %cst_23 : f32 to vector<50x128xf32>
    %28 = arith.maximumf %26, %27 : vector<50x128xf32>
    %c0_24 = arith.constant 0 : index
    %c0_25 = arith.constant 0 : index
    %29 = vector.load %arg10[%c0_24, %c0_25] : memref<50x50xf32, #tpu.memory_space<vmem>>, vector<50x50xf32>
    %cst_26 = arith.constant dense<0.000000e+00> : vector<50x128xf32>
    %30 = tpu.matmul %29, %28, %cst_26 {dimension_numbers = #tpu.dot_dimension_numbers<[1], [0], [0], [1], [0, 0, 1, 1], [], []>} : vector<50x50xf32>, vector<50x128xf32>, vector<50x128xf32> -> vector<50x128xf32>
    %c0_27 = arith.constant 0 : index
    %c0_28 = arith.constant 0 : index
    %31 = vector.load %arg11[%c0_27, %c0_28] : memref<50x1xf32, #tpu.memory_space<vmem>>, vector<50x1xf32>
    %32 = vector.broadcast %31 : vector<50x1xf32> to vector<50x128xf32>
    %33 = arith.addf %30, %32 : vector<50x128xf32>
    %cst_29 = arith.constant 0.000000e+00 : f32
    %34 = vector.broadcast %cst_29 : f32 to vector<50x128xf32>
    %35 = arith.maximumf %33, %34 : vector<50x128xf32>
    %c0_30 = arith.constant 0 : index
    %c0_31 = arith.constant 0 : index
    %36 = vector.load %arg12[%c0_30, %c0_31] : memref<50x50xf32, #tpu.memory_space<vmem>>, vector<50x50xf32>
    %cst_32 = arith.constant dense<0.000000e+00> : vector<50x128xf32>
    %37 = tpu.matmul %36, %35, %cst_32 {dimension_numbers = #tpu.dot_dimension_numbers<[1], [0], [0], [1], [0, 0, 1, 1], [], []>} : vector<50x50xf32>, vector<50x128xf32>, vector<50x128xf32> -> vector<50x128xf32>
    %c0_33 = arith.constant 0 : index
    %c0_34 = arith.constant 0 : index
    %38 = vector.load %arg13[%c0_33, %c0_34] : memref<50x1xf32, #tpu.memory_space<vmem>>, vector<50x1xf32>
    %39 = vector.broadcast %38 : vector<50x1xf32> to vector<50x128xf32>
    %40 = arith.addf %37, %39 : vector<50x128xf32>
    %cst_35 = arith.constant 0.000000e+00 : f32
    %41 = vector.broadcast %cst_35 : f32 to vector<50x128xf32>
    %42 = arith.maximumf %40, %41 : vector<50x128xf32>
    %c0_36 = arith.constant 0 : index
    %c0_37 = arith.constant 0 : index
    %43 = vector.load %arg14[%c0_36, %c0_37] : memref<5x50xf32, #tpu.memory_space<vmem>>, vector<5x50xf32>
    %cst_38 = arith.constant dense<0.000000e+00> : vector<5x128xf32>
    %44 = tpu.matmul %43, %42, %cst_38 {dimension_numbers = #tpu.dot_dimension_numbers<[1], [0], [0], [1], [0, 0, 1, 1], [], []>} : vector<5x50xf32>, vector<50x128xf32>, vector<5x128xf32> -> vector<5x128xf32>
    %c0_39 = arith.constant 0 : index
    %c0_40 = arith.constant 0 : index
    %45 = vector.load %arg15[%c0_39, %c0_40] : memref<5x1xf32, #tpu.memory_space<vmem>>, vector<5x1xf32>
    %46 = vector.broadcast %45 : vector<5x1xf32> to vector<5x128xf32>
    %47 = arith.addf %44, %46 : vector<5x128xf32>
    %c0_41 = arith.constant 0 : index
    %c0_42 = arith.constant 0 : index
    %48 = vector.load %arg16[%c0_41, %c0_42] : memref<5x128xf32, #tpu.memory_space<vmem>>, vector<5x128xf32>
    tpu.vector_store %arg16[%c0_41, %c0_42], %47 {strides = array<i32>} : memref<5x128xf32, #tpu.memory_space<vmem>>, vector<5x128xf32>,
    return
  }
  func.func @transform_0(%arg0: i32) -> (i32, i32) {
    %c0_i32 = arith.constant 0 : i32
    %c0_i32_0 = arith.constant 0 : i32
    return %c0_i32, %arg0 : i32, i32
  }
  func.func @transform_1(%arg0: i32) -> (i32, i32) {
    %c0_i32 = arith.constant 0 : i32
    %c0_i32_0 = arith.constant 0 : i32
    %c0_i32_1 = arith.constant 0 : i32
    return %c0_i32, %c0_i32_0 : i32, i32
  }
  func.func @transform_2(%arg0: i32) -> (i32, i32) {
    %c0_i32 = arith.constant 0 : i32
    %c0_i32_0 = arith.constant 0 : i32
    %c0_i32_1 = arith.constant 0 : i32
    return %c0_i32, %c0_i32_0 : i32, i32
  }
  func.func @transform_3(%arg0: i32) -> (i32, i32) {
    %c0_i32 = arith.constant 0 : i32
    %c0_i32_0 = arith.constant 0 : i32
    %c0_i32_1 = arith.constant 0 : i32
    return %c0_i32, %c0_i32_0 : i32, i32
  }
  func.func @transform_4(%arg0: i32) -> (i32, i32) {
    %c0_i32 = arith.constant 0 : i32
    %c0_i32_0 = arith.constant 0 : i32
    %c0_i32_1 = arith.constant 0 : i32
    return %c0_i32, %c0_i32_0 : i32, i32
  }
  func.func @transform_5(%arg0: i32) -> (i32, i32) {
    %c0_i32 = arith.constant 0 : i32
    %c0_i32_0 = arith.constant 0 : i32
    %c0_i32_1 = arith.constant 0 : i32
    return %c0_i32, %c0_i32_0 : i32, i32
  }
  func.func @transform_6(%arg0: i32) -> (i32, i32) {
    %c0_i32 = arith.constant 0 : i32
    %c0_i32_0 = arith.constant 0 : i32
    %c0_i32_1 = arith.constant 0 : i32
    return %c0_i32, %c0_i32_0 : i32, i32
  }
  func.func @transform_7(%arg0: i32) -> (i32, i32) {
    %c0_i32 = arith.constant 0 : i32
    %c0_i32_0 = arith.constant 0 : i32
    %c0_i32_1 = arith.constant 0 : i32
    return %c0_i32, %c0_i32_0 : i32, i32
  }
  func.func @transform_8(%arg0: i32) -> (i32, i32) {
    %c0_i32 = arith.constant 0 : i32
    %c0_i32_0 = arith.constant 0 : i32
    %c0_i32_1 = arith.constant 0 : i32
    return %c0_i32, %c0_i32_0 : i32, i32
  }
  func.func @transform_9(%arg0: i32) -> (i32, i32) {
    %c0_i32 = arith.constant 0 : i32
    %c0_i32_0 = arith.constant 0 : i32
    %c0_i32_1 = arith.constant 0 : i32
    return %c0_i32, %c0_i32_0 : i32, i32
  }
  func.func @transform_10(%arg0: i32) -> (i32, i32) {
    %c0_i32 = arith.constant 0 : i32
    %c0_i32_0 = arith.constant 0 : i32
    %c0_i32_1 = arith.constant 0 : i32
    return %c0_i32, %c0_i32_0 : i32, i32
  }
  func.func @transform_11(%arg0: i32) -> (i32, i32) {
    %c0_i32 = arith.constant 0 : i32
    %c0_i32_0 = arith.constant 0 : i32
    %c0_i32_1 = arith.constant 0 : i32
    return %c0_i32, %c0_i32_0 : i32, i32
  }
  func.func @transform_12(%arg0: i32) -> (i32, i32) {
    %c0_i32 = arith.constant 0 : i32
    %c0_i32_0 = arith.constant 0 : i32
    %c0_i32_1 = arith.constant 0 : i32
    return %c0_i32, %c0_i32_0 : i32, i32
  }
  func.func @transform_13(%arg0: i32) -> (i32, i32) {
    %c0_i32 = arith.constant 0 : i32
    %c0_i32_0 = arith.constant 0 : i32
    %c0_i32_1 = arith.constant 0 : i32
    return %c0_i32, %c0_i32_0 : i32, i32
  }
  func.func @transform_14(%arg0: i32) -> (i32, i32) {
    %c0_i32 = arith.constant 0 : i32
    %c0_i32_0 = arith.constant 0 : i32
    %c0_i32_1 = arith.constant 0 : i32
    return %c0_i32, %c0_i32_0 : i32, i32
  }
  func.func @transform_15(%arg0: i32) -> (i32, i32) {
    %c0_i32 = arith.constant 0 : i32
    %c0_i32_0 = arith.constant 0 : i32
    return %c0_i32, %arg0 : i32, i32
  }
}

</mosaic_0001>

<llo_original>
// kernel: _acas_forward_padded.1
$region0: #{_acas_forward_padded.1}
  #allocation0 [shape = 'u32[]', space=smem, size = 0x4, offset = 0x4, fixed_abs, tag = 'smem constant byte address 0x4 - core index']
  #allocation1 [shape = 'u32[144,128]{1,0:T(1,128)}', space=vmem, size = 0x12000, scoped, tag = 'internal scratch']
  %s0 = inlined_call_operand.vmem [shape: f32[5,128], index: 0, kind: input, shape index: {}]
  %s1 = inlined_call_operand.vmem [shape: f32[50,5], index: 1, kind: input, shape index: {}]
  %s2 = inlined_call_operand.vmem [shape: f32[50,1], index: 2, kind: input, shape index: {}]
  %s3 = inlined_call_operand.vmem [shape: f32[50,50], index: 3, kind: input, shape index: {}]
  %s4 = inlined_call_operand.vmem [shape: f32[50,1], index: 4, kind: input, shape index: {}]
  %s5 = inlined_call_operand.vmem [shape: f32[50,50], index: 5, kind: input, shape index: {}]
  %s6 = inlined_call_operand.vmem [shape: f32[50,1], index: 6, kind: input, shape index: {}]
  %s7 = inlined_call_operand.vmem [shape: f32[50,50], index: 7, kind: input, shape index: {}]
  %s8 = inlined_call_operand.vmem [shape: f32[50,1], index: 8, kind: input, shape index: {}]
  %s9 = inlined_call_operand.vmem [shape: f32[50,50], index: 9, kind: input, shape index: {}]
  %s10 = inlined_call_operand.vmem [shape: f32[50,1], index: 10, kind: input, shape index: {}]
  %s11 = inlined_call_operand.vmem [shape: f32[50,50], index: 11, kind: input, shape index: {}]
  %s12 = inlined_call_operand.vmem [shape: f32[50,1], index: 12, kind: input, shape index: {}]
  %s13 = inlined_call_operand.vmem [shape: f32[5,50], index: 13, kind: input, shape index: {}]
  %s14 = inlined_call_operand.vmem [shape: f32[5,1], index: 14, kind: input, shape index: {}]
  %s15 = inlined_call_operand.hbm [shape: f32[5,128], index: 15, kind: output, shape index: {}]
  %s16 = sld [smem:[#allocation0]]
  $region70: #{_acas_forward_padded.1} parent=0
    _
  %s18 = ssub.s32 1, %s16
  %s19 = scalar_select 0, %s18, %s16
  $region1: #{_acas_forward_padded.1} parent=0
    #allocation2 [shape = 'u8[4096]{0}', space=vmem, size = 0x1000, scoped, tag = 'output window, operand 0, single buffered']
    #allocation3 [shape = 's32[1]{0}', space=sflag, size = 0x4, scoped, tag = 'scoped memory for _acas_forward_padded.1']
    %20 = vsyncpa [#allocation3], 0
    // Predicated region
    $region2: #{_acas_forward_padded.1} parent=1 // pred_check
      _
    $region3: #{_acas_forward_padded.1} parent=1 // pred_check_branch
      %22 = sbr.rel (0) target = $region5
    $region4: #{_acas_forward_padded.1} parent=1 // pred_region
      _
    $region5: #{_acas_forward_padded.1} parent=1 // pred_fallthru
      _
    // Predicated region
    $region6: #{_acas_forward_padded.1} parent=1 // pred_check
      _
    $region7: #{_acas_forward_padded.1} parent=1 // pred_check_branch
      %24 = sbr.rel (0) target = $region9
    $region8: #{_acas_forward_padded.1} parent=1 // pred_region
      _
    $region9: #{_acas_forward_padded.1} parent=1 // pred_fallthru
      _
    // Predicated region
    $region10: #{_acas_forward_padded.1} parent=1 // pred_check
      _
    $region11: #{_acas_forward_padded.1} parent=1 // pred_check_branch
      %26 = sbr.rel (0) target = $region13
    $region12: #{_acas_forward_padded.1} parent=1 // pred_region
      _
    $region13: #{_acas_forward_padded.1} parent=1 // pred_fallthru
      _
    // Predicated region
    $region14: #{_acas_forward_padded.1} parent=1 // pred_check
      _
    $region15: #{_acas_forward_padded.1} parent=1 // pred_check_branch
      %28 = sbr.rel (0) target = $region17
    $region16: #{_acas_forward_padded.1} parent=1 // pred_region
      _
    $region17: #{_acas_forward_padded.1} parent=1 // pred_fallthru
      _
    // Predicated region
    $region18: #{_acas_forward_padded.1} parent=1 // pred_check
      _
    $region19: #{_acas_forward_padded.1} parent=1 // pred_check_branch
      %30 = sbr.rel (0) target = $region21
    $region20: #{_acas_forward_padded.1} parent=1 // pred_region
      _
    $region21: #{_acas_forward_padded.1} parent=1 // pred_fallthru
      _
    // Predicated region
    $region22: #{_acas_forward_padded.1} parent=1 // pred_check
      _
    $region23: #{_acas_forward_padded.1} parent=1 // pred_check_branch
      %32 = sbr.rel (0) target = $region25
    $region24: #{_acas_forward_padded.1} parent=1 // pred_region
      _
    $region25: #{_acas_forward_padded.1} parent=1 // pred_fallthru
      _
    // Predicated region
    $region26: #{_acas_forward_padded.1} parent=1 // pred_check
      _
    $region27: #{_acas_forward_padded.1} parent=1 // pred_check_branch
      %34 = sbr.rel (0) target = $region29
    $region28: #{_acas_forward_padded.1} parent=1 // pred_region
      _
    $region29: #{_acas_forward_padded.1} parent=1 // pred_fallthru
      _
    // Predicated region
    $region30: #{_acas_forward_padded.1} parent=1 // pred_check
      _
    $region31: #{_acas_forward_padded.1} parent=1 // pred_check_branch
      %36 = sbr.rel (0) target = $region33
    $region32: #{_acas_forward_padded.1} parent=1 // pred_region
      _
    $region33: #{_acas_forward_padded.1} parent=1 // pred_fallthru
      _
    // Predicated region
    $region34: #{_acas_forward_padded.1} parent=1 // pred_check
      _
    $region35: #{_acas_forward_padded.1} parent=1 // pred_check_branch
      %38 = sbr.rel (0) target = $region37
    $region36: #{_acas_forward_padded.1} parent=1 // pred_region
      _
    $region37: #{_acas_forward_padded.1} parent=1 // pred_fallthru
      _
    // Predicated region
    $region38: #{_acas_forward_padded.1} parent=1 // pred_check
      _
    $region39: #{_acas_forward_padded.1} parent=1 // pred_check_branch
      %40 = sbr.rel (0) target = $region41
    $region40: #{_acas_forward_padded.1} parent=1 // pred_region
      _
    $region41: #{_acas_forward_padded.1} parent=1 // pred_fallthru
      _
    // Predicated region
    $region42: #{_acas_forward_padded.1} parent=1 // pred_check
      _
    $region43: #{_acas_forward_padded.1} parent=1 // pred_check_branch
      %42 = sbr.rel (0) target = $region45
    $region44: #{_acas_forward_padded.1} parent=1 // pred_region
      _
    $region45: #{_acas_forward_padded.1} parent=1 // pred_fallthru
      _
    // Predicated region
    $region46: #{_acas_forward_padded.1} parent=1 // pred_check
      _
    $region47: #{_acas_forward_padded.1} parent=1 // pred_check_branch
      %44 = sbr.rel (0) target = $region49
    $region48: #{_acas_forward_padded.1} parent=1 // pred_region
      _
    $region49: #{_acas_forward_padded.1} parent=1 // pred_fallthru
      _
    // Predicated region
    $region50: #{_acas_forward_padded.1} parent=1 // pred_check
      _
    $region51: #{_acas_forward_padded.1} parent=1 // pred_check_branch
      %46 = sbr.rel (0) target = $region53
    $region52: #{_acas_forward_padded.1} parent=1 // pred_region
      _
    $region53: #{_acas_forward_padded.1} parent=1 // pred_fallthru
      _
    // Predicated region
    $region54: #{_acas_forward_padded.1} parent=1 // pred_check
      _
    $region55: #{_acas_forward_padded.1} parent=1 // pred_check_branch
      %48 = sbr.rel (0) target = $region57
    $region56: #{_acas_forward_padded.1} parent=1 // pred_region
      _
    $region57: #{_acas_forward_padded.1} parent=1 // pred_fallthru
      _
    // Predicated region
    $region58: #{_acas_forward_padded.1} parent=1 // pred_check
      _
    $region59: #{_acas_forward_padded.1} parent=1 // pred_check_branch
      %50 = sbr.rel (0) target = $region61
    $region60: #{_acas_forward_padded.1} parent=1 // pred_region
      _
    $region61: #{_acas_forward_padded.1} parent=1 // pred_fallthru
      _
    %v51 = vld [vmem:[%s0] sm:$0x1f]
    %v52 = vld [vmem:[%s1] sm:$0xff]
    %v53 = vld [vmem:[%s1 + $0x8] sm:$0xff]
    %v54 = vld [vmem:[%s1 + $0x10] sm:$0xff]
    %v55 = vld [vmem:[%s1 + $0x18] sm:$0xff]
    %v56 = vld [vmem:[%s1 + $0x20] sm:$0xff]
    %v57 = vld [vmem:[%s1 + $0x28] sm:$0xff]
    %v58 = vld [vmem:[%s1 + $0x30] sm:$0x3]
    %v59 = vld [vmem:[%s2] sm:$0xff]
    %v60 = vld [vmem:[%s2 + $0x8] sm:$0xff]
    %v61 = vld [vmem:[%s2 + $0x10] sm:$0xff]
    %v62 = vld [vmem:[%s2 + $0x18] sm:$0xff]
    %v63 = vld [vmem:[%s2 + $0x20] sm:$0xff]
    %v64 = vld [vmem:[%s2 + $0x28] sm:$0xff]
    %v65 = vld [vmem:[%s2 + $0x30] sm:$0x3]
    %67 = vset.pattern.permute.xlu0 0
    %68 = vperm.xlu0 %67, %v59
    %v69 = vpop.permute.xlu0 %68
    %72 = vset.pattern.permute.xlu0 0
    %73 = vperm.xlu0 %72, %v60
    %v74 = vpop.permute.xlu0 %73
    %77 = vset.pattern.permute.xlu0 0
    %78 = vperm.xlu0 %77, %v61
    %v79 = vpop.permute.xlu0 %78
    %82 = vset.pattern.permute.xlu0 0
    %83 = vperm.xlu0 %82, %v62
    %v84 = vpop.permute.xlu0 %83
    %87 = vset.pattern.permute.xlu0 0
    %88 = vperm.xlu0 %87, %v63
    %v89 = vpop.permute.xlu0 %88
    %92 = vset.pattern.permute.xlu0 0
    %93 = vperm.xlu0 %92, %v64
    %v94 = vpop.permute.xlu0 %93
    %97 = vset.pattern.permute.xlu0 0
    %98 = vperm.xlu0 %97, %v65
    %v99 = vpop.permute.xlu0 %98
    %vm101 = vcmask 39936
    %v103 = vsel %vm101, %v52, 0
    %v106 = vsel %vm101, %v53, 0
    %v109 = vsel %vm101, %v54, 0
    %v112 = vsel %vm101, %v55, 0
    %v115 = vsel %vm101, %v56, 0
    %v118 = vsel %vm101, %v57, 0
    %v121 = vsel %vm101, %v58, 0
    %vm123 = vcmask 1044480
    %v125 = vsel %vm123, %v51, 0
    %127 = vmatprep.subr.mxu0 0.0
    %128 = vmatpush1.msra.mxu0 0.0
    %129 = vmatprep.subr.mxu0 0.0
    %130 = vmatpush1.msra.mxu0 0.0
    %131 = vmatprep.subr.mxu0 0.0
    %132 = vmatpush1.msra.mxu0 0.0
    %133 = vmatprep.subr.mxu0 0.0
    %134 = vmatpush1.msra.mxu0 0.0
    %135 = vmatprep.subr.mxu0 0.0
    %136 = vmatpush1.msra.mxu0 0.0
    %137 = vmatprep.subr.mxu0 0.0
    %138 = vmatpush1.msra.mxu0 0.0
    %139 = vmatprep.subr.mxu0 0.0
    %140 = vmatpush1.msra.mxu0 0.0
    %141 = vmatprep.subr.mxu0 0.0
    %142 = vmatpush1.msra.mxu0 0.0
    %143 = vmatprep.subr.mxu0 0.0
    %144 = vmatpush1.msra.mxu0 0.0
    %145 = vmatprep.subr.mxu0 0.0
    %146 = vmatpush1.msra.mxu0 0.0
    %147 = vmatprep.subr.mxu0 0.0
    %148 = vmatpush1.msra.mxu0 0.0
    %149 = vmatprep.subr.mxu0 0.0
    %150 = vmatpush1.msra.mxu0 0.0
    %151 = vmatprep.subr.mxu0 0.0
    %152 = vmatpush1.msra.mxu0 0.0
    %153 = vmatprep.subr.mxu0 0.0
    %154 = vmatpush1.msra.mxu0 0.0
    %155 = vmatprep.subr.mxu0 0.0
    %156 = vmatpush1.msra.mxu0 0.0
    %157 = vmatprep.subr.mxu0 0.0
    %158 = vmatpush1.msra.mxu0 %v125
    %159 = vmatprep.subr.mxu0 0.0
    %160 = vmatpush2.msra.mxu0 0.0
    %161 = vmatprep.subr.mxu0 0.0
    %162 = vmatpush2.msra.mxu0 0.0
    %163 = vmatprep.subr.mxu0 0.0
    %164 = vmatpush2.msra.mxu0 0.0
    %165 = vmatprep.subr.mxu0 0.0
    %166 = vmatpush2.msra.mxu0 0.0
    %167 = vmatprep.subr.mxu0 0.0
    %168 = vmatpush2.msra.mxu0 0.0
    %169 = vmatprep.subr.mxu0 0.0
    %170 = vmatpush2.msra.mxu0 0.0
    %171 = vmatprep.subr.mxu0 0.0
    %172 = vmatpush2.msra.mxu0 0.0
    %173 = vmatprep.subr.mxu0 0.0
    %174 = vmatpush2.msra.mxu0 0.0
    %175 = vmatprep.subr.mxu0 0.0
    %176 = vmatpush2.msra.mxu0 0.0
    %177 = vmatprep.subr.mxu0 0.0
    %178 = vmatpush2.msra.mxu0 0.0
    %179 = vmatprep.subr.mxu0 0.0
    %180 = vmatpush2.msra.mxu0 0.0
    %181 = vmatprep.subr.mxu0 0.0
    %182 = vmatpush2.msra.mxu0 0.0
    %183 = vmatprep.subr.mxu0 0.0
    %184 = vmatpush2.msra.mxu0 0.0
    %185 = vmatprep.subr.mxu0 0.0
    %186 = vmatpush2.msra.mxu0 0.0
    %187 = vmatprep.subr.mxu0 0.0
    %188 = vmatpush2.msra.mxu0 0.0
    %189 = vmatprep.subr.mxu0 0.0
    %190 = vmatpush2.msra.mxu0 0.0
    %191 = vmatprep.mubr.f32.mxu0 0.0
    %192 = vmatmul.mubr.f32.gmra.mxu0 %v103
    %v193 = vpop.f32.mrf.mxu0
    %v194 = vadd.f32 %v69, %v193
    %v195 = vpop.f32.mrf.mxu0
    %196 = vmatprep.mubr.f32.mxu0 0.0
    %197 = vmatmul.mubr.f32.gmra.mxu0 %v106
    %v198 = vpop.f32.mrf.mxu0
    %v199 = vadd.f32 %v74, %v198
    %v200 = vpop.f32.mrf.mxu0
    %201 = vmatprep.mubr.f32.mxu0 0.0
    %202 = vmatmul.mubr.f32.gmra.mxu0 %v109
    %v203 = vpop.f32.mrf.mxu0
    %v204 = vadd.f32 %v79, %v203
    %v205 = vpop.f32.mrf.mxu0
    %206 = vmatprep.mubr.f32.mxu0 0.0
    %207 = vmatmul.mubr.f32.gmra.mxu0 %v112
    %v208 = vpop.f32.mrf.mxu0
    %v209 = vadd.f32 %v84, %v208
    %v210 = vpop.f32.mrf.mxu0
    %211 = vmatprep.mubr.f32.mxu0 0.0
    %212 = vmatmul.mubr.f32.gmra.mxu0 %v115
    %v213 = vpop.f32.mrf.mxu0
    %v214 = vadd.f32 %v89, %v213
    %v215 = vpop.f32.mrf.mxu0
    %216 = vmatprep.mubr.f32.mxu0 0.0
    %217 = vmatmul.mubr.f32.gmra.mxu0 %v118
    %v218 = vpop.f32.mrf.mxu0
    %v219 = vadd.f32 %v94, %v218
    %v220 = vpop.f32.mrf.mxu0
    %221 = vmatprep.mubr.f32.mxu0 0.0
    %222 = vmatmul.mubr.f32.gmra.mxu0 %v121
    %v223 = vpop.f32.mrf.mxu0
    %v224 = vadd.f32 %v99, %v223
    %v225 = vpop.f32.mrf.mxu0
    %226 = vdwg.mxu0
    %v227 = vmax.f32 %v194, 0.0
    %v228 = vmax.f32 %v199, 0.0
    %v229 = vmax.f32 %v204, 0.0
    %v230 = vmax.f32 %v209, 0.0
    %v231 = vmax.f32 %v214, 0.0
    %v232 = vmax.f32 %v219, 0.0
    %v233 = vmax.f32 %v224, 0.0
    %v234 = vld [vmem:[%s3] sm:$0xff]
    %v235 = vld [vmem:[%s3 + $0x8] sm:$0xff]
    %v236 = vld [vmem:[%s3 + $0x10] sm:$0xff]
    %v237 = vld [vmem:[%s3 + $0x18] sm:$0xff]
    %v238 = vld [vmem:[%s3 + $0x20] sm:$0xff]
    %v239 = vld [vmem:[%s3 + $0x28] sm:$0xff]
    %v240 = vld [vmem:[%s3 + $0x30] sm:$0x3]
    %v241 = vld [vmem:[%s4] sm:$0xff]
    %v242 = vld [vmem:[%s4 + $0x8] sm:$0xff]
    %v243 = vld [vmem:[%s4 + $0x10] sm:$0xff]
    %v244 = vld [vmem:[%s4 + $0x18] sm:$0xff]
    %v245 = vld [vmem:[%s4 + $0x20] sm:$0xff]
    %v246 = vld [vmem:[%s4 + $0x28] sm:$0xff]
    %v247 = vld [vmem:[%s4 + $0x30] sm:$0x3]
    %249 = vset.pattern.permute.xlu0 0
    %250 = vperm.xlu0 %249, %v241
    %v251 = vpop.permute.xlu0 %250
    %254 = vset.pattern.permute.xlu0 0
    %255 = vperm.xlu0 %254, %v242
    %v256 = vpop.permute.xlu0 %255
    %259 = vset.pattern.permute.xlu0 0
    %260 = vperm.xlu0 %259, %v243
    %v261 = vpop.permute.xlu0 %260
    %264 = vset.pattern.permute.xlu0 0
    %265 = vperm.xlu0 %264, %v244
    %v266 = vpop.permute.xlu0 %265
    %269 = vset.pattern.permute.xlu0 0
    %270 = vperm.xlu0 %269, %v245
    %v271 = vpop.permute.xlu0 %270
    %274 = vset.pattern.permute.xlu0 0
    %275 = vperm.xlu0 %274, %v246
    %v276 = vpop.permute.xlu0 %275
    %279 = vset.pattern.permute.xlu0 0
    %280 = vperm.xlu0 %279, %v247
    %v281 = vpop.permute.xlu0 %280
    %vm283 = vcmask 408576
    %v285 = vsel %vm283, %v234, 0
    %v288 = vsel %vm283, %v235, 0
    %v291 = vsel %vm283, %v236, 0
    %v294 = vsel %vm283, %v237, 0
    %v297 = vsel %vm283, %v238, 0
    %v300 = vsel %vm283, %v239, 0
    %v303 = vsel %vm283, %v240, 0
    %vm305 = vcmask 1041408
    %v307 = vsel %vm305, %v233, 0
    %309 = vmatprep.subr.mxu0 0.0
    %310 = vmatpush1.msra.mxu0 0.0
    %311 = vmatprep.subr.mxu0 0.0
    %312 = vmatpush1.msra.mxu0 0.0
    %313 = vmatprep.subr.mxu0 0.0
    %314 = vmatpush1.msra.mxu0 0.0
    %315 = vmatprep.subr.mxu0 0.0
    %316 = vmatpush1.msra.mxu0 0.0
    %317 = vmatprep.subr.mxu0 0.0
    %318 = vmatpush1.msra.mxu0 0.0
    %319 = vmatprep.subr.mxu0 0.0
    %320 = vmatpush1.msra.mxu0 0.0
    %321 = vmatprep.subr.mxu0 0.0
    %322 = vmatpush1.msra.mxu0 0.0
    %323 = vmatprep.subr.mxu0 0.0
    %324 = vmatpush1.msra.mxu0 0.0
    %325 = vmatprep.subr.mxu0 0.0
    %326 = vmatpush1.msra.mxu0 0.0
    %327 = vmatprep.subr.mxu0 0.0
    %328 = vmatpush1.msra.mxu0 %v307
    %329 = vmatprep.subr.mxu0 0.0
    %330 = vmatpush1.msra.mxu0 %v232
    %331 = vmatprep.subr.mxu0 0.0
    %332 = vmatpush1.msra.mxu0 %v231
    %333 = vmatprep.subr.mxu0 0.0
    %334 = vmatpush1.msra.mxu0 %v230
    %335 = vmatprep.subr.mxu0 0.0
    %336 = vmatpush1.msra.mxu0 %v229
    %337 = vmatprep.subr.mxu0 0.0
    %338 = vmatpush1.msra.mxu0 %v228
    %339 = vmatprep.subr.mxu0 0.0
    %340 = vmatpush1.msra.mxu0 %v227
    %341 = vmatprep.subr.mxu0 0.0
    %342 = vmatpush2.msra.mxu0 0.0
    %343 = vmatprep.subr.mxu0 0.0
    %344 = vmatpush2.msra.mxu0 0.0
    %345 = vmatprep.subr.mxu0 0.0
    %346 = vmatpush2.msra.mxu0 0.0
    %347 = vmatprep.subr.mxu0 0.0
    %348 = vmatpush2.msra.mxu0 0.0
    %349 = vmatprep.subr.mxu0 0.0
    %350 = vmatpush2.msra.mxu0 0.0
    %351 = vmatprep.subr.mxu0 0.0
    %352 = vmatpush2.msra.mxu0 0.0
    %353 = vmatprep.subr.mxu0 0.0
    %354 = vmatpush2.msra.mxu0 0.0
    %355 = vmatprep.subr.mxu0 0.0
    %356 = vmatpush2.msra.mxu0 0.0
    %357 = vmatprep.subr.mxu0 0.0
    %358 = vmatpush2.msra.mxu0 0.0
    %359 = vmatprep.subr.mxu0 0.0
    %360 = vmatpush2.msra.mxu0 0.0
    %361 = vmatprep.subr.mxu0 0.0
    %362 = vmatpush2.msra.mxu0 0.0
    %363 = vmatprep.subr.mxu0 0.0
    %364 = vmatpush2.msra.mxu0 0.0
    %365 = vmatprep.subr.mxu0 0.0
    %366 = vmatpush2.msra.mxu0 0.0
    %367 = vmatprep.subr.mxu0 0.0
    %368 = vmatpush2.msra.mxu0 0.0
    %369 = vmatprep.subr.mxu0 0.0
    %370 = vmatpush2.msra.mxu0 0.0
    %371 = vmatprep.subr.mxu0 0.0
    %372 = vmatpush2.msra.mxu0 0.0
    %373 = vmatprep.mubr.f32.mxu0 0.0
    %374 = vmatmul.mubr.f32.gmra.mxu0 %v285
    %v375 = vpop.f32.mrf.mxu0
    %v376 = vadd.f32 %v251, %v375
    %v377 = vpop.f32.mrf.mxu0
    %378 = vmatprep.mubr.f32.mxu0 0.0
    %379 = vmatmul.mubr.f32.gmra.mxu0 %v288
    %v380 = vpop.f32.mrf.mxu0
    %v381 = vadd.f32 %v256, %v380
    %v382 = vpop.f32.mrf.mxu0
    %383 = vmatprep.mubr.f32.mxu0 0.0
    %384 = vmatmul.mubr.f32.gmra.mxu0 %v291
    %v385 = vpop.f32.mrf.mxu0
    %v386 = vadd.f32 %v261, %v385
    %v387 = vpop.f32.mrf.mxu0
    %388 = vmatprep.mubr.f32.mxu0 0.0
    %389 = vmatmul.mubr.f32.gmra.mxu0 %v294
    %v390 = vpop.f32.mrf.mxu0
    %v391 = vadd.f32 %v266, %v390
    %v392 = vpop.f32.mrf.mxu0
    %393 = vmatprep.mubr.f32.mxu0 0.0
    %394 = vmatmul.mubr.f32.gmra.mxu0 %v297
    %v395 = vpop.f32.mrf.mxu0
    %v396 = vadd.f32 %v271, %v395
    %v397 = vpop.f32.mrf.mxu0
    %398 = vmatprep.mubr.f32.mxu0 0.0
    %399 = vmatmul.mubr.f32.gmra.mxu0 %v300
    %v400 = vpop.f32.mrf.mxu0
    %v401 = vadd.f32 %v276, %v400
    %v402 = vpop.f32.mrf.mxu0
    %403 = vmatprep.mubr.f32.mxu0 0.0
    %404 = vmatmul.mubr.f32.gmra.mxu0 %v303
    %v405 = vpop.f32.mrf.mxu0
    %v406 = vadd.f32 %v281, %v405
    %v407 = vpop.f32.mrf.mxu0
    %408 = vdwg.mxu0
    %v409 = vmax.f32 %v376, 0.0
    %v410 = vmax.f32 %v381, 0.0
    %v411 = vmax.f32 %v386, 0.0
    %v412 = vmax.f32 %v391, 0.0
    %v413 = vmax.f32 %v396, 0.0
    %v414 = vmax.f32 %v401, 0.0
    %v415 = vmax.f32 %v406, 0.0
    %v416 = vld [vmem:[%s5] sm:$0xff]
    %v417 = vld [vmem:[%s5 + $0x8] sm:$0xff]
    %v418 = vld [vmem:[%s5 + $0x10] sm:$0xff]
    %v419 = vld [vmem:[%s5 + $0x18] sm:$0xff]
    %v420 = vld [vmem:[%s5 + $0x20] sm:$0xff]
    %v421 = vld [vmem:[%s5 + $0x28] sm:$0xff]
    %v422 = vld [vmem:[%s5 + $0x30] sm:$0x3]
    %v423 = vld [vmem:[%s6] sm:$0xff]
    %v424 = vld [vmem:[%s6 + $0x8] sm:$0xff]
    %v425 = vld [vmem:[%s6 + $0x10] sm:$0xff]
    %v426 = vld [vmem:[%s6 + $0x18] sm:$0xff]
    %v427 = vld [vmem:[%s6 + $0x20] sm:$0xff]
    %v428 = vld [vmem:[%s6 + $0x28] sm:$0xff]
    %v429 = vld [vmem:[%s6 + $0x30] sm:$0x3]
    %431 = vset.pattern.permute.xlu0 0
    %432 = vperm.xlu0 %431, %v423
    %v433 = vpop.permute.xlu0 %432
    %436 = vset.pattern.permute.xlu0 0
    %437 = vperm.xlu0 %436, %v424
    %v438 = vpop.permute.xlu0 %437
    %441 = vset.pattern.permute.xlu0 0
    %442 = vperm.xlu0 %441, %v425
    %v443 = vpop.permute.xlu0 %442
    %446 = vset.pattern.permute.xlu0 0
    %447 = vperm.xlu0 %446, %v426
    %v448 = vpop.permute.xlu0 %447
    %451 = vset.pattern.permute.xlu0 0
    %452 = vperm.xlu0 %451, %v427
    %v453 = vpop.permute.xlu0 %452
    %456 = vset.pattern.permute.xlu0 0
    %457 = vperm.xlu0 %456, %v428
    %v458 = vpop.permute.xlu0 %457
    %461 = vset.pattern.permute.xlu0 0
    %462 = vperm.xlu0 %461, %v429
    %v463 = vpop.permute.xlu0 %462
    %v466 = vsel %vm283, %v416, 0
    %v469 = vsel %vm283, %v417, 0
    %v472 = vsel %vm283, %v418, 0
    %v475 = vsel %vm283, %v419, 0
    %v478 = vsel %vm283, %v420, 0
    %v481 = vsel %vm283, %v421, 0
    %v484 = vsel %vm283, %v422, 0
    %v487 = vsel %vm305, %v415, 0
    %489 = vmatprep.subr.mxu0 0.0
    %490 = vmatpush1.msra.mxu0 0.0
    %491 = vmatprep.subr.mxu0 0.0
    %492 = vmatpush1.msra.mxu0 0.0
    %493 = vmatprep.subr.mxu0 0.0
    %494 = vmatpush1.msra.mxu0 0.0
    %495 = vmatprep.subr.mxu0 0.0
    %496 = vmatpush1.msra.mxu0 0.0
    %497 = vmatprep.subr.mxu0 0.0
    %498 = vmatpush1.msra.mxu0 0.0
    %499 = vmatprep.subr.mxu0 0.0
    %500 = vmatpush1.msra.mxu0 0.0
    %501 = vmatprep.subr.mxu0 0.0
    %502 = vmatpush1.msra.mxu0 0.0
    %503 = vmatprep.subr.mxu0 0.0
    %504 = vmatpush1.msra.mxu0 0.0
    %505 = vmatprep.subr.mxu0 0.0
    %506 = vmatpush1.msra.mxu0 0.0
    %507 = vmatprep.subr.mxu0 0.0
    %508 = vmatpush1.msra.mxu0 %v487
    %509 = vmatprep.subr.mxu0 0.0
    %510 = vmatpush1.msra.mxu0 %v414
    %511 = vmatprep.subr.mxu0 0.0
    %512 = vmatpush1.msra.mxu0 %v413
    %513 = vmatprep.subr.mxu0 0.0
    %514 = vmatpush1.msra.mxu0 %v412
    %515 = vmatprep.subr.mxu0 0.0
    %516 = vmatpush1.msra.mxu0 %v411
    %517 = vmatprep.subr.mxu0 0.0
    %518 = vmatpush1.msra.mxu0 %v410
    %519 = vmatprep.subr.mxu0 0.0
    %520 = vmatpush1.msra.mxu0 %v409
    %521 = vmatprep.subr.mxu0 0.0
    %522 = vmatpush2.msra.mxu0 0.0
    %523 = vmatprep.subr.mxu0 0.0
    %524 = vmatpush2.msra.mxu0 0.0
    %525 = vmatprep.subr.mxu0 0.0
    %526 = vmatpush2.msra.mxu0 0.0
    %527 = vmatprep.subr.mxu0 0.0
    %528 = vmatpush2.msra.mxu0 0.0
    %529 = vmatprep.subr.mxu0 0.0
    %530 = vmatpush2.msra.mxu0 0.0
    %531 = vmatprep.subr.mxu0 0.0
    %532 = vmatpush2.msra.mxu0 0.0
    %533 = vmatprep.subr.mxu0 0.0
    %534 = vmatpush2.msra.mxu0 0.0
    %535 = vmatprep.subr.mxu0 0.0
    %536 = vmatpush2.msra.mxu0 0.0
    %537 = vmatprep.subr.mxu0 0.0
    %538 = vmatpush2.msra.mxu0 0.0
    %539 = vmatprep.subr.mxu0 0.0
    %540 = vmatpush2.msra.mxu0 0.0
    %541 = vmatprep.subr.mxu0 0.0
    %542 = vmatpush2.msra.mxu0 0.0
    %543 = vmatprep.subr.mxu0 0.0
    %544 = vmatpush2.msra.mxu0 0.0
    %545 = vmatprep.subr.mxu0 0.0
    %546 = vmatpush2.msra.mxu0 0.0
    %547 = vmatprep.subr.mxu0 0.0
    %548 = vmatpush2.msra.mxu0 0.0
    %549 = vmatprep.subr.mxu0 0.0
    %550 = vmatpush2.msra.mxu0 0.0
    %551 = vmatprep.subr.mxu0 0.0
    %552 = vmatpush2.msra.mxu0 0.0
    %553 = vmatprep.mubr.f32.mxu0 0.0
    %554 = vmatmul.mubr.f32.gmra.mxu0 %v466
    %v555 = vpop.f32.mrf.mxu0
    %v556 = vadd.f32 %v433, %v555
    %v557 = vpop.f32.mrf.mxu0
    %558 = vmatprep.mubr.f32.mxu0 0.0
    %559 = vmatmul.mubr.f32.gmra.mxu0 %v469
    %v560 = vpop.f32.mrf.mxu0
    %v561 = vadd.f32 %v438, %v560
    %v562 = vpop.f32.mrf.mxu0
    %563 = vmatprep.mubr.f32.mxu0 0.0
    %564 = vmatmul.mubr.f32.gmra.mxu0 %v472
    %v565 = vpop.f32.mrf.mxu0
    %v566 = vadd.f32 %v443, %v565
    %v567 = vpop.f32.mrf.mxu0
    %568 = vmatprep.mubr.f32.mxu0 0.0
    %569 = vmatmul.mubr.f32.gmra.mxu0 %v475
    %v570 = vpop.f32.mrf.mxu0
    %v571 = vadd.f32 %v448, %v570
    %v572 = vpop.f32.mrf.mxu0
    %573 = vmatprep.mubr.f32.mxu0 0.0
    %574 = vmatmul.mubr.f32.gmra.mxu0 %v478
    %v575 = vpop.f32.mrf.mxu0
    %v576 = vadd.f32 %v453, %v575
    %v577 = vpop.f32.mrf.mxu0
    %578 = vmatprep.mubr.f32.mxu0 0.0
    %579 = vmatmul.mubr.f32.gmra.mxu0 %v481
    %v580 = vpop.f32.mrf.mxu0
    %v581 = vadd.f32 %v458, %v580
    %v582 = vpop.f32.mrf.mxu0
    %583 = vmatprep.mubr.f32.mxu0 0.0
    %584 = vmatmul.mubr.f32.gmra.mxu0 %v484
    %v585 = vpop.f32.mrf.mxu0
    %v586 = vadd.f32 %v463, %v585
    %v587 = vpop.f32.mrf.mxu0
    %588 = vdwg.mxu0
    %v589 = vmax.f32 %v556, 0.0
    %v590 = vmax.f32 %v561, 0.0
    %v591 = vmax.f32 %v566, 0.0
    %v592 = vmax.f32 %v571, 0.0
    %v593 = vmax.f32 %v576, 0.0
    %v594 = vmax.f32 %v581, 0.0
    %v595 = vmax.f32 %v586, 0.0
    %v596 = vld [vmem:[%s7] sm:$0xff]
    %v597 = vld [vmem:[%s7 + $0x8] sm:$0xff]
    %v598 = vld [vmem:[%s7 + $0x10] sm:$0xff]
    %v599 = vld [vmem:[%s7 + $0x18] sm:$0xff]
    %v600 = vld [vmem:[%s7 + $0x20] sm:$0xff]
    %v601 = vld [vmem:[%s7 + $0x28] sm:$0xff]
    %v602 = vld [vmem:[%s7 + $0x30] sm:$0x3]
    %v603 = vld [vmem:[%s8] sm:$0xff]
    %v604 = vld [vmem:[%s8 + $0x8] sm:$0xff]
    %v605 = vld [vmem:[%s8 + $0x10] sm:$0xff]
    %v606 = vld [vmem:[%s8 + $0x18] sm:$0xff]
    %v607 = vld [vmem:[%s8 + $0x20] sm:$0xff]
    %v608 = vld [vmem:[%s8 + $0x28] sm:$0xff]
    %v609 = vld [vmem:[%s8 + $0x30] sm:$0x3]
    %611 = vset.pattern.permute.xlu0 0
    %612 = vperm.xlu0 %611, %v603
    %v613 = vpop.permute.xlu0 %612
    %616 = vset.pattern.permute.xlu0 0
    %617 = vperm.xlu0 %616, %v604
    %v618 = vpop.permute.xlu0 %617
    %621 = vset.pattern.permute.xlu0 0
    %622 = vperm.xlu0 %621, %v605
    %v623 = vpop.permute.xlu0 %622
    %626 = vset.pattern.permute.xlu0 0
    %627 = vperm.xlu0 %626, %v606
    %v628 = vpop.permute.xlu0 %627
    %631 = vset.pattern.permute.xlu0 0
    %632 = vperm.xlu0 %631, %v607
    %v633 = vpop.permute.xlu0 %632
    %636 = vset.pattern.permute.xlu0 0
    %637 = vperm.xlu0 %636, %v608
    %v638 = vpop.permute.xlu0 %637
    %641 = vset.pattern.permute.xlu0 0
    %642 = vperm.xlu0 %641, %v609
    %v643 = vpop.permute.xlu0 %642
    %v646 = vsel %vm283, %v596, 0
    %v649 = vsel %vm283, %v597, 0
    %v652 = vsel %vm283, %v598, 0
    %v655 = vsel %vm283, %v599, 0
    %v658 = vsel %vm283, %v600, 0
    %v661 = vsel %vm283, %v601, 0
    %v664 = vsel %vm283, %v602, 0
    %v667 = vsel %vm305, %v595, 0
    %669 = vmatprep.subr.mxu0 0.0
    %670 = vmatpush1.msra.mxu0 0.0
    %671 = vmatprep.subr.mxu0 0.0
    %672 = vmatpush1.msra.mxu0 0.0
    %673 = vmatprep.subr.mxu0 0.0
    %674 = vmatpush1.msra.mxu0 0.0
    %675 = vmatprep.subr.mxu0 0.0
    %676 = vmatpush1.msra.mxu0 0.0
    %677 = vmatprep.subr.mxu0 0.0
    %678 = vmatpush1.msra.mxu0 0.0
    %679 = vmatprep.subr.mxu0 0.0
    %680 = vmatpush1.msra.mxu0 0.0
    %681 = vmatprep.subr.mxu0 0.0
    %682 = vmatpush1.msra.mxu0 0.0
    %683 = vmatprep.subr.mxu0 0.0
    %684 = vmatpush1.msra.mxu0 0.0
    %685 = vmatprep.subr.mxu0 0.0
    %686 = vmatpush1.msra.mxu0 0.0
    %687 = vmatprep.subr.mxu0 0.0
    %688 = vmatpush1.msra.mxu0 %v667
    %689 = vmatprep.subr.mxu0 0.0
    %690 = vmatpush1.msra.mxu0 %v594
    %691 = vmatprep.subr.mxu0 0.0
    %692 = vmatpush1.msra.mxu0 %v593
    %693 = vmatprep.subr.mxu0 0.0
    %694 = vmatpush1.msra.mxu0 %v592
    %695 = vmatprep.subr.mxu0 0.0
    %696 = vmatpush1.msra.mxu0 %v591
    %697 = vmatprep.subr.mxu0 0.0
    %698 = vmatpush1.msra.mxu0 %v590
    %699 = vmatprep.subr.mxu0 0.0
    %700 = vmatpush1.msra.mxu0 %v589
    %701 = vmatprep.subr.mxu0 0.0
    %702 = vmatpush2.msra.mxu0 0.0
    %703 = vmatprep.subr.mxu0 0.0
    %704 = vmatpush2.msra.mxu0 0.0
    %705 = vmatprep.subr.mxu0 0.0
    %706 = vmatpush2.msra.mxu0 0.0
    %707 = vmatprep.subr.mxu0 0.0
    %708 = vmatpush2.msra.mxu0 0.0
    %709 = vmatprep.subr.mxu0 0.0
    %710 = vmatpush2.msra.mxu0 0.0
    %711 = vmatprep.subr.mxu0 0.0
    %712 = vmatpush2.msra.mxu0 0.0
    %713 = vmatprep.subr.mxu0 0.0
    %714 = vmatpush2.msra.mxu0 0.0
    %715 = vmatprep.subr.mxu0 0.0
    %716 = vmatpush2.msra.mxu0 0.0
    %717 = vmatprep.subr.mxu0 0.0
    %718 = vmatpush2.msra.mxu0 0.0
    %719 = vmatprep.subr.mxu0 0.0
    %720 = vmatpush2.msra.mxu0 0.0
    %721 = vmatprep.subr.mxu0 0.0
    %722 = vmatpush2.msra.mxu0 0.0
    %723 = vmatprep.subr.mxu0 0.0
    %724 = vmatpush2.msra.mxu0 0.0
    %725 = vmatprep.subr.mxu0 0.0
    %726 = vmatpush2.msra.mxu0 0.0
    %727 = vmatprep.subr.mxu0 0.0
    %728 = vmatpush2.msra.mxu0 0.0
    %729 = vmatprep.subr.mxu0 0.0
    %730 = vmatpush2.msra.mxu0 0.0
    %731 = vmatprep.subr.mxu0 0.0
    %732 = vmatpush2.msra.mxu0 0.0
    %733 = vmatprep.mubr.f32.mxu0 0.0
    %734 = vmatmul.mubr.f32.gmra.mxu0 %v646
    %v735 = vpop.f32.mrf.mxu0
    %v736 = vadd.f32 %v613, %v735
    %v737 = vpop.f32.mrf.mxu0
    %738 = vmatprep.mubr.f32.mxu0 0.0
    %739 = vmatmul.mubr.f32.gmra.mxu0 %v649
    %v740 = vpop.f32.mrf.mxu0
    %v741 = vadd.f32 %v618, %v740
    %v742 = vpop.f32.mrf.mxu0
    %743 = vmatprep.mubr.f32.mxu0 0.0
    %744 = vmatmul.mubr.f32.gmra.mxu0 %v652
    %v745 = vpop.f32.mrf.mxu0
    %v746 = vadd.f32 %v623, %v745
    %v747 = vpop.f32.mrf.mxu0
    %748 = vmatprep.mubr.f32.mxu0 0.0
    %749 = vmatmul.mubr.f32.gmra.mxu0 %v655
    %v750 = vpop.f32.mrf.mxu0
    %v751 = vadd.f32 %v628, %v750
    %v752 = vpop.f32.mrf.mxu0
    %753 = vmatprep.mubr.f32.mxu0 0.0
    %754 = vmatmul.mubr.f32.gmra.mxu0 %v658
    %v755 = vpop.f32.mrf.mxu0
    %v756 = vadd.f32 %v633, %v755
    %v757 = vpop.f32.mrf.mxu0
    %758 = vmatprep.mubr.f32.mxu0 0.0
    %759 = vmatmul.mubr.f32.gmra.mxu0 %v661
    %v760 = vpop.f32.mrf.mxu0
    %v761 = vadd.f32 %v638, %v760
    %v762 = vpop.f32.mrf.mxu0
    %763 = vmatprep.mubr.f32.mxu0 0.0
    %764 = vmatmul.mubr.f32.gmra.mxu0 %v664
    %v765 = vpop.f32.mrf.mxu0
    %v766 = vadd.f32 %v643, %v765
    %v767 = vpop.f32.mrf.mxu0
    %768 = vdwg.mxu0
    %v769 = vmax.f32 %v736, 0.0
    %v770 = vmax.f32 %v741, 0.0
    %v771 = vmax.f32 %v746, 0.0
    %v772 = vmax.f32 %v751, 0.0
    %v773 = vmax.f32 %v756, 0.0
    %v774 = vmax.f32 %v761, 0.0
    %v775 = vmax.f32 %v766, 0.0
    %v776 = vld [vmem:[%s9] sm:$0xff]
    %v777 = vld [vmem:[%s9 + $0x8] sm:$0xff]
    %v778 = vld [vmem:[%s9 + $0x10] sm:$0xff]
    %v779 = vld [vmem:[%s9 + $0x18] sm:$0xff]
    %v780 = vld [vmem:[%s9 + $0x20] sm:$0xff]
    %v781 = vld [vmem:[%s9 + $0x28] sm:$0xff]
    %v782 = vld [vmem:[%s9 + $0x30] sm:$0x3]
    %v783 = vld [vmem:[%s10] sm:$0xff]
    %v784 = vld [vmem:[%s10 + $0x8] sm:$0xff]
    %v785 = vld [vmem:[%s10 + $0x10] sm:$0xff]
    %v786 = vld [vmem:[%s10 + $0x18] sm:$0xff]
    %v787 = vld [vmem:[%s10 + $0x20] sm:$0xff]
    %v788 = vld [vmem:[%s10 + $0x28] sm:$0xff]
    %v789 = vld [vmem:[%s10 + $0x30] sm:$0x3]
    %791 = vset.pattern.permute.xlu0 0
    %792 = vperm.xlu0 %791, %v783
    %v793 = vpop.permute.xlu0 %792
    %796 = vset.pattern.permute.xlu0 0
    %797 = vperm.xlu0 %796, %v784
    %v798 = vpop.permute.xlu0 %797
    %801 = vset.pattern.permute.xlu0 0
    %802 = vperm.xlu0 %801, %v785
    %v803 = vpop.permute.xlu0 %802
    %806 = vset.pattern.permute.xlu0 0
    %807 = vperm.xlu0 %806, %v786
    %v808 = vpop.permute.xlu0 %807
    %811 = vset.pattern.permute.xlu0 0
    %812 = vperm.xlu0 %811, %v787
    %v813 = vpop.permute.xlu0 %812
    %816 = vset.pattern.permute.xlu0 0
    %817 = vperm.xlu0 %816, %v788
    %v818 = vpop.permute.xlu0 %817
    %821 = vset.pattern.permute.xlu0 0
    %822 = vperm.xlu0 %821, %v789
    %v823 = vpop.permute.xlu0 %822
    %v826 = vsel %vm283, %v776, 0
    %v829 = vsel %vm283, %v777, 0
    %v832 = vsel %vm283, %v778, 0
    %v835 = vsel %vm283, %v779, 0
    %v838 = vsel %vm283, %v780, 0
    %v841 = vsel %vm283, %v781, 0
    %v844 = vsel %vm283, %v782, 0
    %v847 = vsel %vm305, %v775, 0
    %849 = vmatprep.subr.mxu0 0.0
    %850 = vmatpush1.msra.mxu0 0.0
    %851 = vmatprep.subr.mxu0 0.0
    %852 = vmatpush1.msra.mxu0 0.0
    %853 = vmatprep.subr.mxu0 0.0
    %854 = vmatpush1.msra.mxu0 0.0
    %855 = vmatprep.subr.mxu0 0.0
    %856 = vmatpush1.msra.mxu0 0.0
    %857 = vmatprep.subr.mxu0 0.0
    %858 = vmatpush1.msra.mxu0 0.0
    %859 = vmatprep.subr.mxu0 0.0
    %860 = vmatpush1.msra.mxu0 0.0
    %861 = vmatprep.subr.mxu0 0.0
    %862 = vmatpush1.msra.mxu0 0.0
    %863 = vmatprep.subr.mxu0 0.0
    %864 = vmatpush1.msra.mxu0 0.0
    %865 = vmatprep.subr.mxu0 0.0
    %866 = vmatpush1.msra.mxu0 0.0
    %867 = vmatprep.subr.mxu0 0.0
    %868 = vmatpush1.msra.mxu0 %v847
    %869 = vmatprep.subr.mxu0 0.0
    %870 = vmatpush1.msra.mxu0 %v774
    %871 = vmatprep.subr.mxu0 0.0
    %872 = vmatpush1.msra.mxu0 %v773
    %873 = vmatprep.subr.mxu0 0.0
    %874 = vmatpush1.msra.mxu0 %v772
    %875 = vmatprep.subr.mxu0 0.0
    %876 = vmatpush1.msra.mxu0 %v771
    %877 = vmatprep.subr.mxu0 0.0
    %878 = vmatpush1.msra.mxu0 %v770
    %879 = vmatprep.subr.mxu0 0.0
    %880 = vmatpush1.msra.mxu0 %v769
    %881 = vmatprep.subr.mxu0 0.0
    %882 = vmatpush2.msra.mxu0 0.0
    %883 = vmatprep.subr.mxu0 0.0
    %884 = vmatpush2.msra.mxu0 0.0
    %885 = vmatprep.subr.mxu0 0.0
    %886 = vmatpush2.msra.mxu0 0.0
    %887 = vmatprep.subr.mxu0 0.0
    %888 = vmatpush2.msra.mxu0 0.0
    %889 = vmatprep.subr.mxu0 0.0
    %890 = vmatpush2.msra.mxu0 0.0
    %891 = vmatprep.subr.mxu0 0.0
    %892 = vmatpush2.msra.mxu0 0.0
    %893 = vmatprep.subr.mxu0 0.0
    %894 = vmatpush2.msra.mxu0 0.0
    %895 = vmatprep.subr.mxu0 0.0
    %896 = vmatpush2.msra.mxu0 0.0
    %897 = vmatprep.subr.mxu0 0.0
    %898 = vmatpush2.msra.mxu0 0.0
    %899 = vmatprep.subr.mxu0 0.0
    %900 = vmatpush2.msra.mxu0 0.0
    %901 = vmatprep.subr.mxu0 0.0
    %902 = vmatpush2.msra.mxu0 0.0
    %903 = vmatprep.subr.mxu0 0.0
    %904 = vmatpush2.msra.mxu0 0.0
    %905 = vmatprep.subr.mxu0 0.0
    %906 = vmatpush2.msra.mxu0 0.0
    %907 = vmatprep.subr.mxu0 0.0
    %908 = vmatpush2.msra.mxu0 0.0
    %909 = vmatprep.subr.mxu0 0.0
    %910 = vmatpush2.msra.mxu0 0.0
    %911 = vmatprep.subr.mxu0 0.0
    %912 = vmatpush2.msra.mxu0 0.0
    %913 = vmatprep.mubr.f32.mxu0 0.0
    %914 = vmatmul.mubr.f32.gmra.mxu0 %v826
    %v915 = vpop.f32.mrf.mxu0
    %v916 = vadd.f32 %v793, %v915
    %v917 = vpop.f32.mrf.mxu0
    %918 = vmatprep.mubr.f32.mxu0 0.0
    %919 = vmatmul.mubr.f32.gmra.mxu0 %v829
    %v920 = vpop.f32.mrf.mxu0
    %v921 = vadd.f32 %v798, %v920
    %v922 = vpop.f32.mrf.mxu0
    %923 = vmatprep.mubr.f32.mxu0 0.0
    %924 = vmatmul.mubr.f32.gmra.mxu0 %v832
    %v925 = vpop.f32.mrf.mxu0
    %v926 = vadd.f32 %v803, %v925
    %v927 = vpop.f32.mrf.mxu0
    %928 = vmatprep.mubr.f32.mxu0 0.0
    %929 = vmatmul.mubr.f32.gmra.mxu0 %v835
    %v930 = vpop.f32.mrf.mxu0
    %v931 = vadd.f32 %v808, %v930
    %v932 = vpop.f32.mrf.mxu0
    %933 = vmatprep.mubr.f32.mxu0 0.0
    %934 = vmatmul.mubr.f32.gmra.mxu0 %v838
    %v935 = vpop.f32.mrf.mxu0
    %v936 = vadd.f32 %v813, %v935
    %v937 = vpop.f32.mrf.mxu0
    %938 = vmatprep.mubr.f32.mxu0 0.0
    %939 = vmatmul.mubr.f32.gmra.mxu0 %v841
    %v940 = vpop.f32.mrf.mxu0
    %v941 = vadd.f32 %v818, %v940
    %v942 = vpop.f32.mrf.mxu0
    %943 = vmatprep.mubr.f32.mxu0 0.0
    %944 = vmatmul.mubr.f32.gmra.mxu0 %v844
    %v945 = vpop.f32.mrf.mxu0
    %v946 = vadd.f32 %v823, %v945
    %v947 = vpop.f32.mrf.mxu0
    %948 = vdwg.mxu0
    %v949 = vmax.f32 %v916, 0.0
    %v950 = vmax.f32 %v921, 0.0
    %v951 = vmax.f32 %v926, 0.0
    %v952 = vmax.f32 %v931, 0.0
    %v953 = vmax.f32 %v936, 0.0
    %v954 = vmax.f32 %v941, 0.0
    %v955 = vmax.f32 %v946, 0.0
    %v956 = vld [vmem:[%s11] sm:$0xff]
    %v957 = vld [vmem:[%s11 + $0x8] sm:$0xff]
    %v958 = vld [vmem:[%s11 + $0x10] sm:$0xff]
    %v959 = vld [vmem:[%s11 + $0x18] sm:$0xff]
    %v960 = vld [vmem:[%s11 + $0x20] sm:$0xff]
    %v961 = vld [vmem:[%s11 + $0x28] sm:$0xff]
    %v962 = vld [vmem:[%s11 + $0x30] sm:$0x3]
    %v963 = vld [vmem:[%s12] sm:$0xff]
    %v964 = vld [vmem:[%s12 + $0x8] sm:$0xff]
    %v965 = vld [vmem:[%s12 + $0x10] sm:$0xff]
    %v966 = vld [vmem:[%s12 + $0x18] sm:$0xff]
    %v967 = vld [vmem:[%s12 + $0x20] sm:$0xff]
    %v968 = vld [vmem:[%s12 + $0x28] sm:$0xff]
    %v969 = vld [vmem:[%s12 + $0x30] sm:$0x3]
    %971 = vset.pattern.permute.xlu0 0
    %972 = vperm.xlu0 %971, %v963
    %v973 = vpop.permute.xlu0 %972
    %976 = vset.pattern.permute.xlu0 0
    %977 = vperm.xlu0 %976, %v964
    %v978 = vpop.permute.xlu0 %977
    %981 = vset.pattern.permute.xlu0 0
    %982 = vperm.xlu0 %981, %v965
    %v983 = vpop.permute.xlu0 %982
    %986 = vset.pattern.permute.xlu0 0
    %987 = vperm.xlu0 %986, %v966
    %v988 = vpop.permute.xlu0 %987
    %991 = vset.pattern.permute.xlu0 0
    %992 = vperm.xlu0 %991, %v967
    %v993 = vpop.permute.xlu0 %992
    %996 = vset.pattern.permute.xlu0 0
    %997 = vperm.xlu0 %996, %v968
    %v998 = vpop.permute.xlu0 %997
    %1001 = vset.pattern.permute.xlu0 0
    %1002 = vperm.xlu0 %1001, %v969
    %v1003 = vpop.permute.xlu0 %1002
    %v1006 = vsel %vm283, %v956, 0
    %v1009 = vsel %vm283, %v957, 0
    %v1012 = vsel %vm283, %v958, 0
    %v1015 = vsel %vm283, %v959, 0
    %v1018 = vsel %vm283, %v960, 0
    %v1021 = vsel %vm283, %v961, 0
    %v1024 = vsel %vm283, %v962, 0
    %v1027 = vsel %vm305, %v955, 0
    %1029 = vmatprep.subr.mxu0 0.0
    %1030 = vmatpush1.msra.mxu0 0.0
    %1031 = vmatprep.subr.mxu0 0.0
    %1032 = vmatpush1.msra.mxu0 0.0
    %1033 = vmatprep.subr.mxu0 0.0
    %1034 = vmatpush1.msra.mxu0 0.0
    %1035 = vmatprep.subr.mxu0 0.0
    %1036 = vmatpush1.msra.mxu0 0.0
    %1037 = vmatprep.subr.mxu0 0.0
    %1038 = vmatpush1.msra.mxu0 0.0
    %1039 = vmatprep.subr.mxu0 0.0
    %1040 = vmatpush1.msra.mxu0 0.0
    %1041 = vmatprep.subr.mxu0 0.0
    %1042 = vmatpush1.msra.mxu0 0.0
    %1043 = vmatprep.subr.mxu0 0.0
    %1044 = vmatpush1.msra.mxu0 0.0
    %1045 = vmatprep.subr.mxu0 0.0
    %1046 = vmatpush1.msra.mxu0 0.0
    %1047 = vmatprep.subr.mxu0 0.0
    %1048 = vmatpush1.msra.mxu0 %v1027
    %1049 = vmatprep.subr.mxu0 0.0
    %1050 = vmatpush1.msra.mxu0 %v954
    %1051 = vmatprep.subr.mxu0 0.0
    %1052 = vmatpush1.msra.mxu0 %v953
    %1053 = vmatprep.subr.mxu0 0.0
    %1054 = vmatpush1.msra.mxu0 %v952
    %1055 = vmatprep.subr.mxu0 0.0
    %1056 = vmatpush1.msra.mxu0 %v951
    %1057 = vmatprep.subr.mxu0 0.0
    %1058 = vmatpush1.msra.mxu0 %v950
    %1059 = vmatprep.subr.mxu0 0.0
    %1060 = vmatpush1.msra.mxu0 %v949
    %1061 = vmatprep.subr.mxu0 0.0
    %1062 = vmatpush2.msra.mxu0 0.0
    %1063 = vmatprep.subr.mxu0 0.0
    %1064 = vmatpush2.msra.mxu0 0.0
    %1065 = vmatprep.subr.mxu0 0.0
    %1066 = vmatpush2.msra.mxu0 0.0
    %1067 = vmatprep.subr.mxu0 0.0
    %1068 = vmatpush2.msra.mxu0 0.0
    %1069 = vmatprep.subr.mxu0 0.0
    %1070 = vmatpush2.msra.mxu0 0.0
    %1071 = vmatprep.subr.mxu0 0.0
    %1072 = vmatpush2.msra.mxu0 0.0
    %1073 = vmatprep.subr.mxu0 0.0
    %1074 = vmatpush2.msra.mxu0 0.0
    %1075 = vmatprep.subr.mxu0 0.0
    %1076 = vmatpush2.msra.mxu0 0.0
    %1077 = vmatprep.subr.mxu0 0.0
    %1078 = vmatpush2.msra.mxu0 0.0
    %1079 = vmatprep.subr.mxu0 0.0
    %1080 = vmatpush2.msra.mxu0 0.0
    %1081 = vmatprep.subr.mxu0 0.0
    %1082 = vmatpush2.msra.mxu0 0.0
    %1083 = vmatprep.subr.mxu0 0.0
    %1084 = vmatpush2.msra.mxu0 0.0
    %1085 = vmatprep.subr.mxu0 0.0
    %1086 = vmatpush2.msra.mxu0 0.0
    %1087 = vmatprep.subr.mxu0 0.0
    %1088 = vmatpush2.msra.mxu0 0.0
    %1089 = vmatprep.subr.mxu0 0.0
    %1090 = vmatpush2.msra.mxu0 0.0
    %1091 = vmatprep.subr.mxu0 0.0
    %1092 = vmatpush2.msra.mxu0 0.0
    %1093 = vmatprep.mubr.f32.mxu0 0.0
    %1094 = vmatmul.mubr.f32.gmra.mxu0 %v1006
    %v1095 = vpop.f32.mrf.mxu0
    %v1096 = vadd.f32 %v973, %v1095
    %v1097 = vpop.f32.mrf.mxu0
    %1098 = vmatprep.mubr.f32.mxu0 0.0
    %1099 = vmatmul.mubr.f32.gmra.mxu0 %v1009
    %v1100 = vpop.f32.mrf.mxu0
    %v1101 = vadd.f32 %v978, %v1100
    %v1102 = vpop.f32.mrf.mxu0
    %1103 = vmatprep.mubr.f32.mxu0 0.0
    %1104 = vmatmul.mubr.f32.gmra.mxu0 %v1012
    %v1105 = vpop.f32.mrf.mxu0
    %v1106 = vadd.f32 %v983, %v1105
    %v1107 = vpop.f32.mrf.mxu0
    %1108 = vmatprep.mubr.f32.mxu0 0.0
    %1109 = vmatmul.mubr.f32.gmra.mxu0 %v1015
    %v1110 = vpop.f32.mrf.mxu0
    %v1111 = vadd.f32 %v988, %v1110
    %v1112 = vpop.f32.mrf.mxu0
    %1113 = vmatprep.mubr.f32.mxu0 0.0
    %1114 = vmatmul.mubr.f32.gmra.mxu0 %v1018
    %v1115 = vpop.f32.mrf.mxu0
    %v1116 = vadd.f32 %v993, %v1115
    %v1117 = vpop.f32.mrf.mxu0
    %1118 = vmatprep.mubr.f32.mxu0 0.0
    %1119 = vmatmul.mubr.f32.gmra.mxu0 %v1021
    %v1120 = vpop.f32.mrf.mxu0
    %v1121 = vadd.f32 %v998, %v1120
    %v1122 = vpop.f32.mrf.mxu0
    %1123 = vmatprep.mubr.f32.mxu0 0.0
    %1124 = vmatmul.mubr.f32.gmra.mxu0 %v1024
    %v1125 = vpop.f32.mrf.mxu0
    %v1126 = vadd.f32 %v1003, %v1125
    %v1127 = vpop.f32.mrf.mxu0
    %1128 = vdwg.mxu0
    %v1129 = vmax.f32 %v1096, 0.0
    %v1130 = vmax.f32 %v1101, 0.0
    %v1131 = vmax.f32 %v1106, 0.0
    %v1132 = vmax.f32 %v1111, 0.0
    %v1133 = vmax.f32 %v1116, 0.0
    %v1134 = vmax.f32 %v1121, 0.0
    %v1135 = vmax.f32 %v1126, 0.0
    %v1136 = vld [vmem:[%s13] sm:$0x1f]
    %v1137 = vld [vmem:[%s14] sm:$0x1f]
    %1139 = vset.pattern.permute.xlu0 0
    %1140 = vperm.xlu0 %1139, %v1137
    %v1141 = vpop.permute.xlu0 %1140
    %v1144 = vsel %vm283, %v1136, 0
    %v1147 = vsel %vm305, %v1135, 0
    %1149 = vmatprep.subr.mxu0 0.0
    %1150 = vmatpush1.msra.mxu0 0.0
    %1151 = vmatprep.subr.mxu0 0.0
    %1152 = vmatpush1.msra.mxu0 0.0
    %1153 = vmatprep.subr.mxu0 0.0
    %1154 = vmatpush1.msra.mxu0 0.0
    %1155 = vmatprep.subr.mxu0 0.0
    %1156 = vmatpush1.msra.mxu0 0.0
    %1157 = vmatprep.subr.mxu0 0.0
    %1158 = vmatpush1.msra.mxu0 0.0
    %1159 = vmatprep.subr.mxu0 0.0
    %1160 = vmatpush1.msra.mxu0 0.0
    %1161 = vmatprep.subr.mxu0 0.0
    %1162 = vmatpush1.msra.mxu0 0.0
    %1163 = vmatprep.subr.mxu0 0.0
    %1164 = vmatpush1.msra.mxu0 0.0
    %1165 = vmatprep.subr.mxu0 0.0
    %1166 = vmatpush1.msra.mxu0 0.0
    %1167 = vmatprep.subr.mxu0 0.0
    %1168 = vmatpush1.msra.mxu0 %v1147
    %1169 = vmatprep.subr.mxu0 0.0
    %1170 = vmatpush1.msra.mxu0 %v1134
    %1171 = vmatprep.subr.mxu0 0.0
    %1172 = vmatpush1.msra.mxu0 %v1133
    %1173 = vmatprep.subr.mxu0 0.0
    %1174 = vmatpush1.msra.mxu0 %v1132
    %1175 = vmatprep.subr.mxu0 0.0
    %1176 = vmatpush1.msra.mxu0 %v1131
    %1177 = vmatprep.subr.mxu0 0.0
    %1178 = vmatpush1.msra.mxu0 %v1130
    %1179 = vmatprep.subr.mxu0 0.0
    %1180 = vmatpush1.msra.mxu0 %v1129
    %1181 = vmatprep.subr.mxu0 0.0
    %1182 = vmatpush2.msra.mxu0 0.0
    %1183 = vmatprep.subr.mxu0 0.0
    %1184 = vmatpush2.msra.mxu0 0.0
    %1185 = vmatprep.subr.mxu0 0.0
    %1186 = vmatpush2.msra.mxu0 0.0
    %1187 = vmatprep.subr.mxu0 0.0
    %1188 = vmatpush2.msra.mxu0 0.0
    %1189 = vmatprep.subr.mxu0 0.0
    %1190 = vmatpush2.msra.mxu0 0.0
    %1191 = vmatprep.subr.mxu0 0.0
    %1192 = vmatpush2.msra.mxu0 0.0
    %1193 = vmatprep.subr.mxu0 0.0
    %1194 = vmatpush2.msra.mxu0 0.0
    %1195 = vmatprep.subr.mxu0 0.0
    %1196 = vmatpush2.msra.mxu0 0.0
    %1197 = vmatprep.subr.mxu0 0.0
    %1198 = vmatpush2.msra.mxu0 0.0
    %1199 = vmatprep.subr.mxu0 0.0
    %1200 = vmatpush2.msra.mxu0 0.0
    %1201 = vmatprep.subr.mxu0 0.0
    %1202 = vmatpush2.msra.mxu0 0.0
    %1203 = vmatprep.subr.mxu0 0.0
    %1204 = vmatpush2.msra.mxu0 0.0
    %1205 = vmatprep.subr.mxu0 0.0
    %1206 = vmatpush2.msra.mxu0 0.0
    %1207 = vmatprep.subr.mxu0 0.0
    %1208 = vmatpush2.msra.mxu0 0.0
    %1209 = vmatprep.subr.mxu0 0.0
    %1210 = vmatpush2.msra.mxu0 0.0
    %1211 = vmatprep.subr.mxu0 0.0
    %1212 = vmatpush2.msra.mxu0 0.0
    %1213 = vmatprep.mubr.f32.mxu0 0.0
    %1214 = vmatmul.mubr.f32.gmra.mxu0 %v1144
    %v1215 = vpop.f32.mrf.mxu0
    %v1216 = vadd.f32 %v1141, %v1215
    %v1217 = vpop.f32.mrf.mxu0
    %1218 = vdwg.mxu0
    %1219 = vst [vmem:[#allocation2] sm:$0x1f] %v1216
    // Predicated region
    $region62: #{_acas_forward_padded.1} parent=1 // pred_check
      _
    $region63: #{_acas_forward_padded.1} parent=1 // pred_check_branch
      %1221 = sbr.rel (0) target = $region65
    $region64: #{_acas_forward_padded.1} parent=1 // pred_region
      %s1223 = ssub.s32 128, 128
      %1224 = vsyncadd [#allocation3], %s1223
      %s1226 = sshll.u32 [#allocation2], 4
      %s1227 = int_to_ptr.vmem [resolvable:$true] %s1226
      %1229 = dma.vmem_to_hbm [thread:$0]  %s1227, 128, %s15, [#allocation3]
    $region65: #{_acas_forward_padded.1} parent=1 // pred_fallthru
      _
    // Predicated region
    $region66: #{_acas_forward_padded.1} parent=1 // pred_check
      _
    $region67: #{_acas_forward_padded.1} parent=1 // pred_check_branch
      %1231 = sbr.rel (0) target = $region69
    $region68: #{_acas_forward_padded.1} parent=1 // pred_region
      %1232 = dma.done [#allocation3], 128
    $region69: #{_acas_forward_padded.1} parent=1 // pred_fallthru
      _
    %1233 = vsyncpa [#allocation3], 1

</llo_original>
